<compile_context>
chip_gen: v7x
topology: tpu7x:2x2x1
jax: 0.10.0
libtpu: 0.0.40
codegen_flags: <defaults>
</compile_context>

<pallas_src>
import functools

import jax
import jax.numpy as jnp
from jax import lax
from jax.experimental import pallas as pl
from jax.experimental.pallas import tpu as pltpu


def head_kernel(x_ref, w_ref, o_ref, *, head_size, h_pad):
    # x_ref: (Bt, T, C) block, w_ref: (C, 3*Hp) fused [K | Q | V] weights,
    # o_ref: (Bt, T, Hp) lane-dense (padded) output.
    _, T, _ = x_ref.shape
    x = x_ref[...]                      # native dtype (f32 or bf16) -> MXU fast path
    w = w_ref[...]
    cdt = x.dtype                       # compute dtype for MXU operands

    # Fused QKV projection: (Bt, T, C) x (C, 3Hp) -> (Bt, T, 3Hp), f32 accumulation.
    qkv = lax.dot_general(
        x, w, (((2,), (0,)), ((), ())),
        preferred_element_type=jnp.float32)

    scale = jnp.float32(head_size) ** -0.5        # k.shape[-1] ** -0.5 in the module
    k = qkv[..., 0:h_pad].astype(cdt)                       # (Bt, T, Hp)
    q = (qkv[..., h_pad:2 * h_pad] * scale).astype(cdt)     # scale on q: T*H ops, not T*T
    v = qkv[..., 2 * h_pad:3 * h_pad].astype(cdt)

    # Scores: q . k^T as a contraction over the head dim (no materialized transpose),
    # batched over the batch-block axis.  (Bt, T, T), f32.
    wei = lax.dot_general(
        q, k, (((2,), (2,)), ((0,), (0,))),
        preferred_element_type=jnp.float32)

    # Causal mask (lower triangular). Finite large-negative fill: exp underflows to 0.
    row = lax.broadcasted_iota(jnp.int32, (T, T), 0)
    col = lax.broadcasted_iota(jnp.int32, (T, T), 1)
    wei = jnp.where(col <= row, wei, jnp.float32(-1e30))

    # Numerically-stable softmax along the key axis (kept in f32).
    wei = wei - jnp.max(wei, axis=-1, keepdims=True)
    p = jnp.exp(wei)
    p = p * pl.reciprocal(jnp.sum(p, axis=-1, keepdims=True), approx=True)

    # out = p @ v, batched; feed MXU in the compute dtype, accumulate in f32.
    out = lax.dot_general(
        p.astype(cdt), v, (((2,), (1,)), ((0,), (0,))),
        preferred_element_type=jnp.float32)                 # (Bt, T, Hp)
    o_ref[...] = out.astype(o_ref.dtype)


def head_forward(x, wk, wq, wv):
    """x: (B, T, C); wk/wq/wv: (C, H). Returns (B, T, H)."""
    B, T, C = x.shape
    H = wk.shape[1]

    # Pad the head dim up to a multiple of 128 lanes and fuse [K | Q | V] into one
    # (C, 3*Hp) weight so the projection is a single wide MXU matmul and the kernel
    # output is lane-dense. Zero-padded columns contribute nothing to q.k^T or p@v.
    Hp = max(128, ((H + 127) // 128) * 128)
    pad = ((0, 0), (0, Hp - H))
    w_qkv = jnp.concatenate(
        [jnp.pad(wk, pad), jnp.pad(wq, pad), jnp.pad(wv, pad)], axis=1)   # (C, 3*Hp)

    # Several batch elements per grid step (largest divisor of B that is <= 8) to
    # amortize the ~0.35us/step pipeline overhead and issue larger DMAs.
    Bt = min(B, 8)
    while B % Bt:
        Bt -= 1

    kernel = functools.partial(head_kernel, head_size=H, h_pad=Hp)
    out_padded = pl.pallas_call(
        kernel,
        out_shape=jax.ShapeDtypeStruct((B, T, Hp), x.dtype),
        grid_spec=pltpu.PrefetchScalarGridSpec(
            num_scalar_prefetch=0,
            grid=(B // Bt,),
            in_specs=[
                pl.BlockSpec((Bt, T, C), lambda b: (b, 0, 0)),      # batch block of x
                pl.BlockSpec((C, 3 * Hp), lambda b: (0, 0)),        # shared fused weights
            ],
            out_specs=pl.BlockSpec((Bt, T, Hp), lambda b: (b, 0, 0)),
        ),
        compiler_params=pltpu.CompilerParams(
            dimension_semantics=("parallel",),
        ),
    )(x, w_qkv)

    # Drop the zero-padded head columns.
    return out_padded[..., :H]


def head_reference(x, wk, wq, wv):
    """Plain-JAX reference mirroring the PyTorch forward (dropout in eval mode)."""
    k = x @ wk
    q = x @ wq
    v = x @ wv
    H = k.shape[-1]
    wei = (q @ jnp.swapaxes(k, -2, -1)) * (H ** -0.5)
    T = x.shape[1]
    tril = jnp.tril(jnp.ones((T, T), dtype=bool))
    wei = jnp.where(tril, wei, -jnp.inf)
    wei = jax.nn.softmax(wei, axis=-1)
    return wei @ v


if __name__ == "__main__":
    # Small shapes consistent with the module's structure
    # (module defaults: n_embd=384, block_size=256 — scaled down here).
    B, T = 2, 8            # batch, sequence length (T <= block_size)
    n_embd = 128           # C
    head_size = 32         # H

    key = jax.random.PRNGKey(0)
    kx, kk, kq, kv = jax.random.split(key, 4)

    x = jax.random.normal(kx, (B, T, n_embd), dtype=jnp.float32)
    # nn.Linear(n_embd, head_size, bias=False) has weight (H, C); y = x @ W.T.
    # Store the transposed weights (C, H) so the kernel computes x @ W directly.
    bound = 1.0 / (n_embd ** 0.5)
    wk = jax.random.uniform(kk, (n_embd, head_size), jnp.float32, -bound, bound)
    wq = jax.random.uniform(kq, (n_embd, head_size), jnp.float32, -bound, bound)
    wv = jax.random.uniform(kv, (n_embd, head_size), jnp.float32, -bound, bound)

    out = head_forward(x, wk, wq, wv)
    out = jax.block_until_ready(out)

    ref = head_reference(x, wk, wq, wv)
    assert out.shape == (B, T, head_size)
    # Tolerance accounts for the EUP approx reciprocal in the softmax denominator
    # and the q-prescaled score matmul (different rounding order than the reference).
    assert jnp.allclose(out, ref, atol=2e-3, rtol=2e-3), "mismatch vs reference"

    print("KERNEL_OK")
</pallas_src>

<mosaic_0001>
module attributes {stable_mosaic.version = 11 : i64} {
  func.func @head_kernel(%arg0: i32, %arg1: memref<2x8x128xf32, #tpu.memory_space<vmem>>, %arg2: memref<128x384xf32, #tpu.memory_space<vmem>>, %arg3: memref<2x8x128xf32, #tpu.memory_space<vmem>>) attributes {dimension_semantics = [#tpu.dimension_semantics<parallel>], iteration_bounds = array<i64: 1>, scalar_prefetch = 0 : i64, scratch_operands = 0 : i64, tpu.core_type = #tpu.core_type<tc>, window_params = [{transform_indices = @transform_0, window_bounds = array<i64: 2, 8, 128>}, {pipeline_mode = #tpu.pipeline_mode<synchronous>, transform_indices = @transform_1, window_bounds = array<i64: 128, 384>}, {transform_indices = @transform_2, window_bounds = array<i64: 2, 8, 128>}]} {
    %c0 = arith.constant 0 : index
    %c0_0 = arith.constant 0 : index
    %c0_1 = arith.constant 0 : index
    %0 = vector.load %arg1[%c0, %c0_0, %c0_1] : memref<2x8x128xf32, #tpu.memory_space<vmem>>, vector<2x8x128xf32>
    %c0_2 = arith.constant 0 : index
    %c0_3 = arith.constant 0 : index
    %1 = vector.load %arg2[%c0_2, %c0_3] : memref<128x384xf32, #tpu.memory_space<vmem>>, vector<128x384xf32>
    %cst = arith.constant dense<0.000000e+00> : vector<2x8x384xf32>
    %2 = tpu.matmul %0, %1, %cst {dimension_numbers = #tpu.dot_dimension_numbers<[2], [0], [0, 1], [1], [0, 0, 0, 1, 1, 1], [], []>} : vector<2x8x128xf32>, vector<128x384xf32>, vector<2x8x384xf32> -> vector<2x8x384xf32>
    %cst_4 = arith.constant 3.200000e+01 : f32
    %cst_5 = arith.constant -5.000000e-01 : f32
    %3 = math.powf %cst_4, %cst_5 : f32
    %4 = vector.extract_strided_slice %2 {offsets = [0, 0, 0], sizes = [2, 8, 128], strides = [1, 1, 1]} : vector<2x8x384xf32> to vector<2x8x128xf32>
    %5 = vector.extract_strided_slice %2 {offsets = [0, 0, 128], sizes = [2, 8, 128], strides = [1, 1, 1]} : vector<2x8x384xf32> to vector<2x8x128xf32>
    %6 = vector.broadcast %3 : f32 to vector<2x8x128xf32>
    %7 = arith.mulf %5, %6 : vector<2x8x128xf32>
    %8 = vector.extract_strided_slice %2 {offsets = [0, 0, 256], sizes = [2, 8, 128], strides = [1, 1, 1]} : vector<2x8x384xf32> to vector<2x8x128xf32>
    %cst_6 = arith.constant dense<0.000000e+00> : vector<2x8x8xf32>
    %9 = tpu.matmul %7, %4, %cst_6 {dimension_numbers = #tpu.dot_dimension_numbers<[2], [2], [1], [1], [0, 0, 0, 1, 1, 1], [0], [0]>} : vector<2x8x128xf32>, vector<2x8x128xf32>, vector<2x8x8xf32> -> vector<2x8x8xf32>
    %10 = tpu.iota {dimensions = array<i32: 0>} : vector<8x8xi32>
    %11 = tpu.iota {dimensions = array<i32: 1>} : vector<8x8xi32>
    %12 = arith.cmpi sle, %11, %10 : vector<8x8xi32>
    %cst_7 = arith.constant -1.000000e+30 : f32
    %13 = vector.shape_cast %12 : vector<8x8xi1> to vector<1x8x8xi1>
    %14 = vector.broadcast %13 : vector<1x8x8xi1> to vector<2x8x8xi1>
    %15 = vector.broadcast %cst_7 : f32 to vector<2x8x8xf32>
    %16 = arith.select %14, %9, %15 : vector<2x8x8xi1>, vector<2x8x8xf32>
    %cst_8 = arith.constant dense<0xFF800000> : vector<2x8xf32>
    %17 = vector.multi_reduction <maximumf>, %16, %cst_8 [2] : vector<2x8x8xf32> to vector<2x8xf32>
    %18 = vector.shape_cast %17 : vector<2x8xf32> to vector<2x8x1xf32>
    %19 = vector.broadcast %18 : vector<2x8x1xf32> to vector<2x8x8xf32>
    %20 = arith.subf %16, %19 : vector<2x8x8xf32>
    %21 = math.exp %20 : vector<2x8x8xf32>
    %cst_9 = arith.constant dense<0.000000e+00> : vector<2x8xf32>
    %22 = vector.multi_reduction <add>, %21, %cst_9 [2] : vector<2x8x8xf32> to vector<2x8xf32>
    %23 = vector.shape_cast %22 : vector<2x8xf32> to vector<2x8x1xf32>
    %24 = tpu.reciprocal %23 {approx = true} : vector<2x8x1xf32> -> vector<2x8x1xf32>
    %25 = vector.broadcast %24 : vector<2x8x1xf32> to vector<2x8x8xf32>
    %26 = arith.mulf %21, %25 : vector<2x8x8xf32>
    %cst_10 = arith.constant dense<0.000000e+00> : vector<2x8x128xf32>
    %27 = tpu.matmul %26, %8, %cst_10 {dimension_numbers = #tpu.dot_dimension_numbers<[2], [1], [1], [2], [0, 0, 0, 1, 1, 2], [0], [0]>} : vector<2x8x8xf32>, vector<2x8x128xf32>, vector<2x8x128xf32> -> vector<2x8x128xf32>
    %c0_11 = arith.constant 0 : index
    %c0_12 = arith.constant 0 : index
    %c0_13 = arith.constant 0 : index
    %28 = vector.load %arg3[%c0_11, %c0_12, %c0_13] : memref<2x8x128xf32, #tpu.memory_space<vmem>>, vector<2x8x128xf32>
    tpu.vector_store %arg3[%c0_11, %c0_12, %c0_13], %27 {strides = array<i32>} : memref<2x8x128xf32, #tpu.memory_space<vmem>>, vector<2x8x128xf32>,
    return
  }
  func.func @transform_0(%arg0: i32) -> (i32, i32, i32) {
    %c0_i32 = arith.constant 0 : i32
    %c0_i32_0 = arith.constant 0 : i32
    %c0_i32_1 = arith.constant 0 : i32
    return %arg0, %c0_i32, %c0_i32_0 : i32, i32, i32
  }
  func.func @transform_1(%arg0: i32) -> (i32, i32) {
    %c0_i32 = arith.constant 0 : i32
    %c0_i32_0 = arith.constant 0 : i32
    %c0_i32_1 = arith.constant 0 : i32
    return %c0_i32, %c0_i32_0 : i32, i32
  }
  func.func @transform_2(%arg0: i32) -> (i32, i32, i32) {
    %c0_i32 = arith.constant 0 : i32
    %c0_i32_0 = arith.constant 0 : i32
    %c0_i32_1 = arith.constant 0 : i32
    return %arg0, %c0_i32, %c0_i32_0 : i32, i32, i32
  }
}

</mosaic_0001>

<llo_original>
// kernel: tpu_custom_call.1
$region0: #{tpu_custom_call.1}
  #allocation0 [shape = 'u32[]', space=smem, size = 0x4, offset = 0x4, fixed_abs, tag = 'smem constant byte address 0x4 - core index']
  #allocation1 [shape = 'u32[144,128]{1,0:T(1,128)}', space=vmem, size = 0x12000, scoped, tag = 'internal scratch']
  %s0 = inlined_call_operand.hbm [shape: f32[2,8,128], index: 0, kind: input, shape index: {}]
  %s1 = inlined_call_operand.hbm [shape: f32[128,384], index: 1, kind: input, shape index: {}]
  %s2 = inlined_call_operand.hbm [shape: f32[2,8,128], index: 2, kind: output, shape index: {}]
  %s3 = sld [smem:[#allocation0]]
  $region26: #{tpu_custom_call.1} parent=0
    _
  %s5 = ssub.s32 1, %s3
  %s6 = scalar_select 0, %s5, %s3
  $region1: #{tpu_custom_call.1} parent=0
    #allocation2 [shape = 'u8[8192]{0}', space=vmem, size = 0x2000, scoped, tag = 'input window, operand 0, single buffered']
    #allocation3 [shape = 's32[1]{0}', space=sflag, size = 0x4, scoped, tag = 'scoped memory for tpu_custom_call.1']
    #allocation4 [shape = 's32[1]{0}', space=sflag, size = 0x4, scoped, tag = 'scoped memory for tpu_custom_call.1']
    #allocation5 [shape = 'u8[196608]{0}', space=vmem, size = 0x30000, scoped, tag = 'input window, operand 1, single buffered']
    #allocation6 [shape = 's32[1]{0}', space=sflag, size = 0x4, scoped, tag = 'scoped memory for tpu_custom_call.1']
    #allocation7 [shape = 'u8[8192]{0}', space=vmem, size = 0x2000, scoped, tag = 'output window, operand 0, single buffered']
    %7 = vsyncpa [#allocation3], 0
    %8 = vsyncpa [#allocation6], 0
    %9 = vsyncpa [#allocation4], 0
    // Predicated region
    $region2: #{tpu_custom_call.1} parent=1 // pred_check
      _
    $region3: #{tpu_custom_call.1} parent=1 // pred_check_branch
      %11 = sbr.rel (0) target = $region5
    $region4: #{tpu_custom_call.1} parent=1 // pred_region
      %s13 = ssub.s32 256, 256
      %14 = vsyncadd [#allocation3], %s13
      %s15 = sshll.u32 [#allocation2], 4
      %s16 = int_to_ptr.vmem [resolvable:$true] %s15
      %21 = dma.hbm_to_vmem [thread:$0]  %s0, 256, %s16, [#allocation3], 128, 128, 8
    $region5: #{tpu_custom_call.1} parent=1 // pred_fallthru
      _
    // Predicated region
    $region6: #{tpu_custom_call.1} parent=1 // pred_check
      _
    $region7: #{tpu_custom_call.1} parent=1 // pred_check_branch
      %23 = sbr.rel (0) target = $region9
    $region8: #{tpu_custom_call.1} parent=1 // pred_region
      %s25 = ssub.s32 6144, 6144
      %26 = vsyncadd [#allocation6], %s25
      %s27 = sshll.u32 [#allocation5], 4
      %s28 = int_to_ptr.vmem [resolvable:$true] %s27
      %33 = dma.hbm_to_vmem [thread:$0]  %s1, 6144, %s28, [#allocation6], 384, 384, 24
    $region9: #{tpu_custom_call.1} parent=1 // pred_fallthru
      _
    // Predicated region
    $region10: #{tpu_custom_call.1} parent=1 // pred_check
      _
    $region11: #{tpu_custom_call.1} parent=1 // pred_check_branch
      %35 = sbr.rel (0) target = $region13
    $region12: #{tpu_custom_call.1} parent=1 // pred_region
      %36 = dma.done [#allocation3], 256
    $region13: #{tpu_custom_call.1} parent=1 // pred_fallthru
      _
    // Predicated region
    $region14: #{tpu_custom_call.1} parent=1 // pred_check
      _
    $region15: #{tpu_custom_call.1} parent=1 // pred_check_branch
      %38 = sbr.rel (0) target = $region17
    $region16: #{tpu_custom_call.1} parent=1 // pred_region
      %39 = dma.done [#allocation6], 6144
    $region17: #{tpu_custom_call.1} parent=1 // pred_fallthru
      _
    %v40 = vld [vmem:[#allocation2] sm:$0xff]
    %v41 = vld [vmem:[#allocation2 + $0x8] sm:$0xff]
    %v42 = vld [vmem:[#allocation5] sm:$0xff]
    %v43 = vld [vmem:[#allocation5 + $0x8] sm:$0xff]
    %v44 = vld [vmem:[#allocation5 + $0x10] sm:$0xff]
    %v45 = vld [vmem:[#allocation5 + $0x18] sm:$0xff]
    %v46 = vld [vmem:[#allocation5 + $0x20] sm:$0xff]
    %v47 = vld [vmem:[#allocation5 + $0x28] sm:$0xff]
    %v48 = vld [vmem:[#allocation5 + $0x30] sm:$0xff]
    %v49 = vld [vmem:[#allocation5 + $0x38] sm:$0xff]
    %v50 = vld [vmem:[#allocation5 + $0x40] sm:$0xff]
    %v51 = vld [vmem:[#allocation5 + $0x48] sm:$0xff]
    %v52 = vld [vmem:[#allocation5 + $0x50] sm:$0xff]
    %v53 = vld [vmem:[#allocation5 + $0x58] sm:$0xff]
    %v54 = vld [vmem:[#allocation5 + $0x60] sm:$0xff]
    %v55 = vld [vmem:[#allocation5 + $0x68] sm:$0xff]
    %v56 = vld [vmem:[#allocation5 + $0x70] sm:$0xff]
    %v57 = vld [vmem:[#allocation5 + $0x78] sm:$0xff]
    %v58 = vld [vmem:[#allocation5 + $0x80] sm:$0xff]
    %v59 = vld [vmem:[#allocation5 + $0x88] sm:$0xff]
    %v60 = vld [vmem:[#allocation5 + $0x90] sm:$0xff]
    %v61 = vld [vmem:[#allocation5 + $0x98] sm:$0xff]
    %v62 = vld [vmem:[#allocation5 + $0xa0] sm:$0xff]
    %v63 = vld [vmem:[#allocation5 + $0xa8] sm:$0xff]
    %v64 = vld [vmem:[#allocation5 + $0xb0] sm:$0xff]
    %v65 = vld [vmem:[#allocation5 + $0xb8] sm:$0xff]
    %v66 = vld [vmem:[#allocation5 + $0xc0] sm:$0xff]
    %v67 = vld [vmem:[#allocation5 + $0xc8] sm:$0xff]
    %v68 = vld [vmem:[#allocation5 + $0xd0] sm:$0xff]
    %v69 = vld [vmem:[#allocation5 + $0xd8] sm:$0xff]
    %v70 = vld [vmem:[#allocation5 + $0xe0] sm:$0xff]
    %v71 = vld [vmem:[#allocation5 + $0xe8] sm:$0xff]
    %v72 = vld [vmem:[#allocation5 + $0xf0] sm:$0xff]
    %v73 = vld [vmem:[#allocation5 + $0xf8] sm:$0xff]
    %v74 = vld [vmem:[#allocation5 + $0x100] sm:$0xff]
    %v75 = vld [vmem:[#allocation5 + $0x108] sm:$0xff]
    %v76 = vld [vmem:[#allocation5 + $0x110] sm:$0xff]
    %v77 = vld [vmem:[#allocation5 + $0x118] sm:$0xff]
    %v78 = vld [vmem:[#allocation5 + $0x120] sm:$0xff]
    %v79 = vld [vmem:[#allocation5 + $0x128] sm:$0xff]
    %v80 = vld [vmem:[#allocation5 + $0x130] sm:$0xff]
    %v81 = vld [vmem:[#allocation5 + $0x138] sm:$0xff]
    %v82 = vld [vmem:[#allocation5 + $0x140] sm:$0xff]
    %v83 = vld [vmem:[#allocation5 + $0x148] sm:$0xff]
    %v84 = vld [vmem:[#allocation5 + $0x150] sm:$0xff]
    %v85 = vld [vmem:[#allocation5 + $0x158] sm:$0xff]
    %v86 = vld [vmem:[#allocation5 + $0x160] sm:$0xff]
    %v87 = vld [vmem:[#allocation5 + $0x168] sm:$0xff]
    %v88 = vld [vmem:[#allocation5 + $0x170] sm:$0xff]
    %v89 = vld [vmem:[#allocation5 + $0x178] sm:$0xff]
    %90 = vmatprep.subr.mxu0 %v43
    %91 = vmatpush1.msra.mxu0 %v42
    %92 = vmatprep.subr.mxu0 %v46
    %93 = vmatpush1.msra.mxu0 %v45
    %94 = vmatprep.subr.mxu0 %v49
    %95 = vmatpush1.msra.mxu0 %v48
    %96 = vmatprep.subr.mxu0 %v52
    %97 = vmatpush1.msra.mxu0 %v51
    %98 = vmatprep.subr.mxu0 %v55
    %99 = vmatpush1.msra.mxu0 %v54
    %100 = vmatprep.subr.mxu0 %v58
    %101 = vmatpush1.msra.mxu0 %v57
    %102 = vmatprep.subr.mxu0 %v61
    %103 = vmatpush1.msra.mxu0 %v60
    %104 = vmatprep.subr.mxu0 %v64
    %105 = vmatpush1.msra.mxu0 %v63
    %106 = vmatprep.subr.mxu0 %v67
    %107 = vmatpush1.msra.mxu0 %v66
    %108 = vmatprep.subr.mxu0 %v70
    %109 = vmatpush1.msra.mxu0 %v69
    %110 = vmatprep.subr.mxu0 %v73
    %111 = vmatpush1.msra.mxu0 %v72
    %112 = vmatprep.subr.mxu0 %v76
    %113 = vmatpush1.msra.mxu0 %v75
    %114 = vmatprep.subr.mxu0 %v79
    %115 = vmatpush1.msra.mxu0 %v78
    %116 = vmatprep.subr.mxu0 %v82
    %117 = vmatpush1.msra.mxu0 %v81
    %118 = vmatprep.subr.mxu0 %v85
    %119 = vmatpush1.msra.mxu0 %v84
    %120 = vmatprep.subr.mxu0 %v88
    %121 = vmatpush1.msra.mxu0 %v87
    %122 = vmatprep.subr.mxu0 0.0
    %123 = vmatpush1.msra.mxu0 0.0
    %124 = vmatprep.subr.mxu0 0.0
    %125 = vmatpush1.msra.mxu0 0.0
    %126 = vmatprep.subr.mxu0 0.0
    %127 = vmatpush1.msra.mxu0 0.0
    %128 = vmatprep.subr.mxu0 0.0
    %129 = vmatpush1.msra.mxu0 0.0
    %130 = vmatprep.subr.mxu0 0.0
    %131 = vmatpush1.msra.mxu0 0.0
    %132 = vmatprep.subr.mxu0 0.0
    %133 = vmatpush1.msra.mxu0 0.0
    %134 = vmatprep.subr.mxu0 0.0
    %135 = vmatpush1.msra.mxu0 0.0
    %136 = vmatprep.subr.mxu0 0.0
    %137 = vmatpush1.msra.mxu0 0.0
    %138 = vmatprep.subr.mxu0 0.0
    %139 = vmatpush1.msra.mxu0 0.0
    %140 = vmatprep.subr.mxu0 0.0
    %141 = vmatpush1.msra.mxu0 0.0
    %142 = vmatprep.subr.mxu0 0.0
    %143 = vmatpush1.msra.mxu0 0.0
    %144 = vmatprep.subr.mxu0 0.0
    %145 = vmatpush1.msra.mxu0 0.0
    %146 = vmatprep.subr.mxu0 0.0
    %147 = vmatpush1.msra.mxu0 0.0
    %148 = vmatprep.subr.mxu0 0.0
    %149 = vmatpush1.msra.mxu0 0.0
    %150 = vmatprep.subr.mxu0 0.0
    %151 = vmatpush1.msra.mxu0 0.0
    %152 = vmatprep.subr.mxu0 0.0
    %153 = vmatpush1.msra.mxu0 0.0
    %154 = vmatprep.mubr.f32.mxu0 0.0
    %155 = vmatmul.mubr.f32.gmra.mrb[0].mxu0 %v40
    %v156 = vpop.f32.mrb[0].mxu0
    %v157 = vadd.f32 0.0, %v156
    %v158 = vpop.f32.mrb[0].mxu0
    %v159 = vadd.f32 0.0, %v158
    %160 = vmatprep.mubr.f32.mxu0 0.0
    %161 = vmatmul.mubr.f32.gmra.mrb[0].mxu0 %v41
    %v162 = vpop.f32.mrb[0].mxu0
    %v163 = vadd.f32 0.0, %v162
    %v164 = vpop.f32.mrb[0].mxu0
    %v165 = vadd.f32 0.0, %v164
    %166 = vdwg.mxu0
    %167 = vmatprep.subr.mxu0 0.0
    %168 = vmatpush1.msra.mxu0 %v44
    %169 = vmatprep.subr.mxu0 0.0
    %170 = vmatpush1.msra.mxu0 %v47
    %171 = vmatprep.subr.mxu0 0.0
    %172 = vmatpush1.msra.mxu0 %v50
    %173 = vmatprep.subr.mxu0 0.0
    %174 = vmatpush1.msra.mxu0 %v53
    %175 = vmatprep.subr.mxu0 0.0
    %176 = vmatpush1.msra.mxu0 %v56
    %177 = vmatprep.subr.mxu0 0.0
    %178 = vmatpush1.msra.mxu0 %v59
    %179 = vmatprep.subr.mxu0 0.0
    %180 = vmatpush1.msra.mxu0 %v62
    %181 = vmatprep.subr.mxu0 0.0
    %182 = vmatpush1.msra.mxu0 %v65
    %183 = vmatprep.subr.mxu0 0.0
    %184 = vmatpush1.msra.mxu0 %v68
    %185 = vmatprep.subr.mxu0 0.0
    %186 = vmatpush1.msra.mxu0 %v71
    %187 = vmatprep.subr.mxu0 0.0
    %188 = vmatpush1.msra.mxu0 %v74
    %189 = vmatprep.subr.mxu0 0.0
    %190 = vmatpush1.msra.mxu0 %v77
    %191 = vmatprep.subr.mxu0 0.0
    %192 = vmatpush1.msra.mxu0 %v80
    %193 = vmatprep.subr.mxu0 0.0
    %194 = vmatpush1.msra.mxu0 %v83
    %195 = vmatprep.subr.mxu0 0.0
    %196 = vmatpush1.msra.mxu0 %v86
    %197 = vmatprep.subr.mxu0 0.0
    %198 = vmatpush1.msra.mxu0 %v89
    %199 = vmatprep.subr.mxu0 0.0
    %200 = vmatpush1.msra.mxu0 0.0
    %201 = vmatprep.subr.mxu0 0.0
    %202 = vmatpush1.msra.mxu0 0.0
    %203 = vmatprep.subr.mxu0 0.0
    %204 = vmatpush1.msra.mxu0 0.0
    %205 = vmatprep.subr.mxu0 0.0
    %206 = vmatpush1.msra.mxu0 0.0
    %207 = vmatprep.subr.mxu0 0.0
    %208 = vmatpush1.msra.mxu0 0.0
    %209 = vmatprep.subr.mxu0 0.0
    %210 = vmatpush1.msra.mxu0 0.0
    %211 = vmatprep.subr.mxu0 0.0
    %212 = vmatpush1.msra.mxu0 0.0
    %213 = vmatprep.subr.mxu0 0.0
    %214 = vmatpush1.msra.mxu0 0.0
    %215 = vmatprep.subr.mxu0 0.0
    %216 = vmatpush1.msra.mxu0 0.0
    %217 = vmatprep.subr.mxu0 0.0
    %218 = vmatpush1.msra.mxu0 0.0
    %219 = vmatprep.subr.mxu0 0.0
    %220 = vmatpush1.msra.mxu0 0.0
    %221 = vmatprep.subr.mxu0 0.0
    %222 = vmatpush1.msra.mxu0 0.0
    %223 = vmatprep.subr.mxu0 0.0
    %224 = vmatpush1.msra.mxu0 0.0
    %225 = vmatprep.subr.mxu0 0.0
    %226 = vmatpush1.msra.mxu0 0.0
    %227 = vmatprep.subr.mxu0 0.0
    %228 = vmatpush1.msra.mxu0 0.0
    %229 = vmatprep.subr.mxu0 0.0
    %230 = vmatpush1.msra.mxu0 0.0
    %231 = vmatprep.mubr.f32.mxu0 0.0
    %232 = vmatmul.mubr.f32.gmra.mrb[0].mxu0 %v40
    %v233 = vpop.f32.mrb[0].mxu0
    %v234 = vadd.f32 0.0, %v233
    %v235 = vpop.f32.mrb[0].mxu0
    %236 = vmatprep.mubr.f32.mxu0 0.0
    %237 = vmatmul.mubr.f32.gmra.mrb[0].mxu0 %v41
    %v238 = vpop.f32.mrb[0].mxu0
    %v239 = vadd.f32 0.0, %v238
    %v240 = vpop.f32.mrb[0].mxu0
    %241 = vdwg.mxu0
    %v242 = vmul.f32 %v159, 0.17677669
    %v243 = vmul.f32 %v165, 0.17677669
    %244 = vmatprep.subr.mxu0 0.0
    %245 = vmatpush1.xpose.msra.mxu0 %v157
    %246 = vmatprep.subr.mxu0 0.0
    %247 = vmatpush1.xpose.msra.mxu0 0.0
    %248 = vmatprep.subr.mxu0 0.0
    %249 = vmatpush1.xpose.msra.mxu0 0.0
    %250 = vmatprep.subr.mxu0 0.0
    %251 = vmatpush1.xpose.msra.mxu0 0.0
    %252 = vmatprep.subr.mxu0 0.0
    %253 = vmatpush1.xpose.msra.mxu0 0.0
    %254 = vmatprep.subr.mxu0 0.0
    %255 = vmatpush1.xpose.msra.mxu0 0.0
    %256 = vmatprep.subr.mxu0 0.0
    %257 = vmatpush1.xpose.msra.mxu0 0.0
    %258 = vmatprep.subr.mxu0 0.0
    %259 = vmatpush1.xpose.msra.mxu0 0.0
    %260 = vmatprep.subr.mxu0 0.0
    %261 = vmatpush1.xpose.msra.mxu0 0.0
    %262 = vmatprep.subr.mxu0 0.0
    %263 = vmatpush1.xpose.msra.mxu0 0.0
    %264 = vmatprep.subr.mxu0 0.0
    %265 = vmatpush1.xpose.msra.mxu0 0.0
    %266 = vmatprep.subr.mxu0 0.0
    %267 = vmatpush1.xpose.msra.mxu0 0.0
    %268 = vmatprep.subr.mxu0 0.0
    %269 = vmatpush1.xpose.msra.mxu0 0.0
    %270 = vmatprep.subr.mxu0 0.0
    %271 = vmatpush1.xpose.msra.mxu0 0.0
    %272 = vmatprep.subr.mxu0 0.0
    %273 = vmatpush1.xpose.msra.mxu0 0.0
    %274 = vmatprep.subr.mxu0 0.0
    %275 = vmatpush1.xpose.msra.mxu0 0.0
    %276 = vmatprep.subr.mxu0 0.0
    %277 = vmatpush1.xpose.msra.mxu0 0.0
    %278 = vmatprep.subr.mxu0 0.0
    %279 = vmatpush1.xpose.msra.mxu0 0.0
    %280 = vmatprep.subr.mxu0 0.0
    %281 = vmatpush1.xpose.msra.mxu0 0.0
    %282 = vmatprep.subr.mxu0 0.0
    %283 = vmatpush1.xpose.msra.mxu0 0.0
    %284 = vmatprep.subr.mxu0 0.0
    %285 = vmatpush1.xpose.msra.mxu0 0.0
    %286 = vmatprep.subr.mxu0 0.0
    %287 = vmatpush1.xpose.msra.mxu0 0.0
    %288 = vmatprep.subr.mxu0 0.0
    %289 = vmatpush1.xpose.msra.mxu0 0.0
    %290 = vmatprep.subr.mxu0 0.0
    %291 = vmatpush1.xpose.msra.mxu0 0.0
    %292 = vmatprep.subr.mxu0 0.0
    %293 = vmatpush1.xpose.msra.mxu0 0.0
    %294 = vmatprep.subr.mxu0 0.0
    %295 = vmatpush1.xpose.msra.mxu0 0.0
    %296 = vmatprep.subr.mxu0 0.0
    %297 = vmatpush1.xpose.msra.mxu0 0.0
    %298 = vmatprep.subr.mxu0 0.0
    %299 = vmatpush1.xpose.msra.mxu0 0.0
    %300 = vmatprep.subr.mxu0 0.0
    %301 = vmatpush1.xpose.msra.mxu0 0.0
    %302 = vmatprep.subr.mxu0 0.0
    %303 = vmatpush1.xpose.msra.mxu0 0.0
    %304 = vmatprep.subr.mxu0 0.0
    %305 = vmatpush1.xpose.msra.mxu0 0.0
    %306 = vmatprep.subr.mxu0 0.0
    %307 = vmatpush1.xpose.msra.mxu0 0.0
    %308 = vmatprep.mubr.f32.mxu0 0.0
    %309 = vmatmul.mubr.f32.gmra.mrb[0].mxu0 %v242
    %v310 = vpop.f32.mrb[0].mxu0
    %v311 = vadd.f32 0.0, %v310
    %v312 = vpop.f32.mrb[0].mxu0
    %313 = vdwg.mxu0
    %314 = vmatprep.subr.mxu0 0.0
    %315 = vmatpush1.xpose.msra.mxu0 %v163
    %316 = vmatprep.subr.mxu0 0.0
    %317 = vmatpush1.xpose.msra.mxu0 0.0
    %318 = vmatprep.subr.mxu0 0.0
    %319 = vmatpush1.xpose.msra.mxu0 0.0
    %320 = vmatprep.subr.mxu0 0.0
    %321 = vmatpush1.xpose.msra.mxu0 0.0
    %322 = vmatprep.subr.mxu0 0.0
    %323 = vmatpush1.xpose.msra.mxu0 0.0
    %324 = vmatprep.subr.mxu0 0.0
    %325 = vmatpush1.xpose.msra.mxu0 0.0
    %326 = vmatprep.subr.mxu0 0.0
    %327 = vmatpush1.xpose.msra.mxu0 0.0
    %328 = vmatprep.subr.mxu0 0.0
    %329 = vmatpush1.xpose.msra.mxu0 0.0
    %330 = vmatprep.subr.mxu0 0.0
    %331 = vmatpush1.xpose.msra.mxu0 0.0
    %332 = vmatprep.subr.mxu0 0.0
    %333 = vmatpush1.xpose.msra.mxu0 0.0
    %334 = vmatprep.subr.mxu0 0.0
    %335 = vmatpush1.xpose.msra.mxu0 0.0
    %336 = vmatprep.subr.mxu0 0.0
    %337 = vmatpush1.xpose.msra.mxu0 0.0
    %338 = vmatprep.subr.mxu0 0.0
    %339 = vmatpush1.xpose.msra.mxu0 0.0
    %340 = vmatprep.subr.mxu0 0.0
    %341 = vmatpush1.xpose.msra.mxu0 0.0
    %342 = vmatprep.subr.mxu0 0.0
    %343 = vmatpush1.xpose.msra.mxu0 0.0
    %344 = vmatprep.subr.mxu0 0.0
    %345 = vmatpush1.xpose.msra.mxu0 0.0
    %346 = vmatprep.subr.mxu0 0.0
    %347 = vmatpush1.xpose.msra.mxu0 0.0
    %348 = vmatprep.subr.mxu0 0.0
    %349 = vmatpush1.xpose.msra.mxu0 0.0
    %350 = vmatprep.subr.mxu0 0.0
    %351 = vmatpush1.xpose.msra.mxu0 0.0
    %352 = vmatprep.subr.mxu0 0.0
    %353 = vmatpush1.xpose.msra.mxu0 0.0
    %354 = vmatprep.subr.mxu0 0.0
    %355 = vmatpush1.xpose.msra.mxu0 0.0
    %356 = vmatprep.subr.mxu0 0.0
    %357 = vmatpush1.xpose.msra.mxu0 0.0
    %358 = vmatprep.subr.mxu0 0.0
    %359 = vmatpush1.xpose.msra.mxu0 0.0
    %360 = vmatprep.subr.mxu0 0.0
    %361 = vmatpush1.xpose.msra.mxu0 0.0
    %362 = vmatprep.subr.mxu0 0.0
    %363 = vmatpush1.xpose.msra.mxu0 0.0
    %364 = vmatprep.subr.mxu0 0.0
    %365 = vmatpush1.xpose.msra.mxu0 0.0
    %366 = vmatprep.subr.mxu0 0.0
    %367 = vmatpush1.xpose.msra.mxu0 0.0
    %368 = vmatprep.subr.mxu0 0.0
    %369 = vmatpush1.xpose.msra.mxu0 0.0
    %370 = vmatprep.subr.mxu0 0.0
    %371 = vmatpush1.xpose.msra.mxu0 0.0
    %372 = vmatprep.subr.mxu0 0.0
    %373 = vmatpush1.xpose.msra.mxu0 0.0
    %374 = vmatprep.subr.mxu0 0.0
    %375 = vmatpush1.xpose.msra.mxu0 0.0
    %376 = vmatprep.subr.mxu0 0.0
    %377 = vmatpush1.xpose.msra.mxu0 0.0
    %378 = vmatprep.mubr.f32.mxu0 0.0
    %379 = vmatmul.mubr.f32.gmra.mrb[0].mxu0 %v243
    %v380 = vpop.f32.mrb[0].mxu0
    %v381 = vadd.f32 0.0, %v380
    %v382 = vpop.f32.mrb[0].mxu0
    %383 = vdwg.mxu0
    %v384 = vlaneseq
    %v385 = vshrl.u32 %v384, 7
    %v386 = vlaneseq
    %v387 = vand.u32 %v386, 127
    %vm388 = vcmp.le.s32.totalorder %v387, %v385
    %v389 = vsel %vm388, 1, 0
    %vm390 = vcmp.eq.s32.totalorder %v389, 1
    %v391 = vsel %vm390, %v311, -1e+30
    %v392 = vsel %vm390, %v381, -1e+30
    %vm393 = vcmask 64512
    %v394 = vsel %vm393, %v391, -inf
    %395 = vmax.xlane.f32.xlu0 %v394
    %v396 = vpop.xlane.xlu0 %395
    %v397 = vsel %vm393, %v392, -inf
    %398 = vmax.xlane.f32.xlu0 %v397
    %v399 = vpop.xlane.xlu0 %398
    %v400 = vsub.f32 %v391, %v396
    %v401 = vsub.f32 %v392, %v399
    %v402 = vmul.f32 %v400, 1.442695
    %v403 = vpow.pop %v402
    %v404 = vmul.f32 %v401, 1.442695
    %v405 = vpow.pop %v404
    %v406 = vsel %vm393, %v403, 0.0
    %407 = vadd.xlane.f32.xlu0 %v406
    %v408 = vpop.xlane.xlu0 %407
    %v409 = vsel %vm393, %v405, 0.0
    %410 = vadd.xlane.f32.xlu0 %v409
    %v411 = vpop.xlane.xlu0 %410
    %v412 = vrcp.pop %v408
    %v413 = vrcp.pop %v411
    %v414 = vmul.f32 %v403, %v412
    %v415 = vmul.f32 %v405, %v413
    %v417 = vsel %vm393, %v414, 0
    %419 = vmatprep.subr.mxu0 0.0
    %420 = vmatpush1.msra.mxu0 %v234
    %421 = vmatprep.subr.mxu0 0.0
    %422 = vmatpush1.msra.mxu0 0.0
    %423 = vmatprep.subr.mxu0 0.0
    %424 = vmatpush1.msra.mxu0 0.0
    %425 = vmatprep.subr.mxu0 0.0
    %426 = vmatpush1.msra.mxu0 0.0
    %427 = vmatprep.subr.mxu0 0.0
    %428 = vmatpush1.msra.mxu0 0.0
    %429 = vmatprep.subr.mxu0 0.0
    %430 = vmatpush1.msra.mxu0 0.0
    %431 = vmatprep.subr.mxu0 0.0
    %432 = vmatpush1.msra.mxu0 0.0
    %433 = vmatprep.subr.mxu0 0.0
    %434 = vmatpush1.msra.mxu0 0.0
    %435 = vmatprep.subr.mxu0 0.0
    %436 = vmatpush1.msra.mxu0 0.0
    %437 = vmatprep.subr.mxu0 0.0
    %438 = vmatpush1.msra.mxu0 0.0
    %439 = vmatprep.subr.mxu0 0.0
    %440 = vmatpush1.msra.mxu0 0.0
    %441 = vmatprep.subr.mxu0 0.0
    %442 = vmatpush1.msra.mxu0 0.0
    %443 = vmatprep.subr.mxu0 0.0
    %444 = vmatpush1.msra.mxu0 0.0
    %445 = vmatprep.subr.mxu0 0.0
    %446 = vmatpush1.msra.mxu0 0.0
    %447 = vmatprep.subr.mxu0 0.0
    %448 = vmatpush1.msra.mxu0 0.0
    %449 = vmatprep.subr.mxu0 0.0
    %450 = vmatpush1.msra.mxu0 0.0
    %451 = vmatprep.subr.mxu0 0.0
    %452 = vmatpush1.msra.mxu0 0.0
    %453 = vmatprep.subr.mxu0 0.0
    %454 = vmatpush1.msra.mxu0 0.0
    %455 = vmatprep.subr.mxu0 0.0
    %456 = vmatpush1.msra.mxu0 0.0
    %457 = vmatprep.subr.mxu0 0.0
    %458 = vmatpush1.msra.mxu0 0.0
    %459 = vmatprep.subr.mxu0 0.0
    %460 = vmatpush1.msra.mxu0 0.0
    %461 = vmatprep.subr.mxu0 0.0
    %462 = vmatpush1.msra.mxu0 0.0
    %463 = vmatprep.subr.mxu0 0.0
    %464 = vmatpush1.msra.mxu0 0.0
    %465 = vmatprep.subr.mxu0 0.0
    %466 = vmatpush1.msra.mxu0 0.0
    %467 = vmatprep.subr.mxu0 0.0
    %468 = vmatpush1.msra.mxu0 0.0
    %469 = vmatprep.subr.mxu0 0.0
    %470 = vmatpush1.msra.mxu0 0.0
    %471 = vmatprep.subr.mxu0 0.0
    %472 = vmatpush1.msra.mxu0 0.0
    %473 = vmatprep.subr.mxu0 0.0
    %474 = vmatpush1.msra.mxu0 0.0
    %475 = vmatprep.subr.mxu0 0.0
    %476 = vmatpush1.msra.mxu0 0.0
    %477 = vmatprep.subr.mxu0 0.0
    %478 = vmatpush1.msra.mxu0 0.0
    %479 = vmatprep.subr.mxu0 0.0
    %480 = vmatpush1.msra.mxu0 0.0
    %481 = vmatprep.subr.mxu0 0.0
    %482 = vmatpush1.msra.mxu0 0.0
    %483 = vmatprep.mubr.f32.mxu0 0.0
    %484 = vmatmul.mubr.f32.gmra.mrb[0].mxu0 %v417
    %v485 = vpop.f32.mrb[0].mxu0
    %v486 = vadd.f32 0.0, %v485
    %v487 = vpop.f32.mrb[0].mxu0
    %488 = vdwg.mxu0
    %v490 = vsel %vm393, %v415, 0
    %492 = vmatprep.subr.mxu0 0.0
    %493 = vmatpush1.msra.mxu0 %v239
    %494 = vmatprep.subr.mxu0 0.0
    %495 = vmatpush1.msra.mxu0 0.0
    %496 = vmatprep.subr.mxu0 0.0
    %497 = vmatpush1.msra.mxu0 0.0
    %498 = vmatprep.subr.mxu0 0.0
    %499 = vmatpush1.msra.mxu0 0.0
    %500 = vmatprep.subr.mxu0 0.0
    %501 = vmatpush1.msra.mxu0 0.0
    %502 = vmatprep.subr.mxu0 0.0
    %503 = vmatpush1.msra.mxu0 0.0
    %504 = vmatprep.subr.mxu0 0.0
    %505 = vmatpush1.msra.mxu0 0.0
    %506 = vmatprep.subr.mxu0 0.0
    %507 = vmatpush1.msra.mxu0 0.0
    %508 = vmatprep.subr.mxu0 0.0
    %509 = vmatpush1.msra.mxu0 0.0
    %510 = vmatprep.subr.mxu0 0.0
    %511 = vmatpush1.msra.mxu0 0.0
    %512 = vmatprep.subr.mxu0 0.0
    %513 = vmatpush1.msra.mxu0 0.0
    %514 = vmatprep.subr.mxu0 0.0
    %515 = vmatpush1.msra.mxu0 0.0
    %516 = vmatprep.subr.mxu0 0.0
    %517 = vmatpush1.msra.mxu0 0.0
    %518 = vmatprep.subr.mxu0 0.0
    %519 = vmatpush1.msra.mxu0 0.0
    %520 = vmatprep.subr.mxu0 0.0
    %521 = vmatpush1.msra.mxu0 0.0
    %522 = vmatprep.subr.mxu0 0.0
    %523 = vmatpush1.msra.mxu0 0.0
    %524 = vmatprep.subr.mxu0 0.0
    %525 = vmatpush1.msra.mxu0 0.0
    %526 = vmatprep.subr.mxu0 0.0
    %527 = vmatpush1.msra.mxu0 0.0
    %528 = vmatprep.subr.mxu0 0.0
    %529 = vmatpush1.msra.mxu0 0.0
    %530 = vmatprep.subr.mxu0 0.0
    %531 = vmatpush1.msra.mxu0 0.0
    %532 = vmatprep.subr.mxu0 0.0
    %533 = vmatpush1.msra.mxu0 0.0
    %534 = vmatprep.subr.mxu0 0.0
    %535 = vmatpush1.msra.mxu0 0.0
    %536 = vmatprep.subr.mxu0 0.0
    %537 = vmatpush1.msra.mxu0 0.0
    %538 = vmatprep.subr.mxu0 0.0
    %539 = vmatpush1.msra.mxu0 0.0
    %540 = vmatprep.subr.mxu0 0.0
    %541 = vmatpush1.msra.mxu0 0.0
    %542 = vmatprep.subr.mxu0 0.0
    %543 = vmatpush1.msra.mxu0 0.0
    %544 = vmatprep.subr.mxu0 0.0
    %545 = vmatpush1.msra.mxu0 0.0
    %546 = vmatprep.subr.mxu0 0.0
    %547 = vmatpush1.msra.mxu0 0.0
    %548 = vmatprep.subr.mxu0 0.0
    %549 = vmatpush1.msra.mxu0 0.0
    %550 = vmatprep.subr.mxu0 0.0
    %551 = vmatpush1.msra.mxu0 0.0
    %552 = vmatprep.subr.mxu0 0.0
    %553 = vmatpush1.msra.mxu0 0.0
    %554 = vmatprep.subr.mxu0 0.0
    %555 = vmatpush1.msra.mxu0 0.0
    %556 = vmatprep.mubr.f32.mxu0 0.0
    %557 = vmatmul.mubr.f32.gmra.mrb[0].mxu0 %v490
    %v558 = vpop.f32.mrb[0].mxu0
    %v559 = vadd.f32 0.0, %v558
    %v560 = vpop.f32.mrb[0].mxu0
    %561 = vdwg.mxu0
    %562 = vst [vmem:[#allocation7] sm:$0xff] %v486
    %563 = vst [vmem:[#allocation7 + $0x8] sm:$0xff] %v559
    // Predicated region
    $region18: #{tpu_custom_call.1} parent=1 // pred_check
      _
    $region19: #{tpu_custom_call.1} parent=1 // pred_check_branch
      %565 = sbr.rel (0) target = $region21
    $region20: #{tpu_custom_call.1} parent=1 // pred_region
      %s567 = ssub.s32 256, 256
      %568 = vsyncadd [#allocation4], %s567
      %s569 = sshll.u32 [#allocation7], 4
      %s570 = int_to_ptr.vmem [resolvable:$true] %s569
      %575 = dma.vmem_to_hbm [thread:$0]  %s570, 256, %s2, [#allocation4], 128, 128, 8
    $region21: #{tpu_custom_call.1} parent=1 // pred_fallthru
      _
    // Predicated region
    $region22: #{tpu_custom_call.1} parent=1 // pred_check
      _
    $region23: #{tpu_custom_call.1} parent=1 // pred_check_branch
      %577 = sbr.rel (0) target = $region25
    $region24: #{tpu_custom_call.1} parent=1 // pred_region
      %578 = dma.done [#allocation4], 256
    $region25: #{tpu_custom_call.1} parent=1 // pred_fallthru
      _
    %579 = vsyncpa [#allocation3], 1
    %580 = vsyncpa [#allocation6], 1
    %581 = vsyncpa [#allocation4], 1

</llo_original>
